<compile_context>
chip_gen: v7x
topology: tpu7x:2x2x1
jax: 0.10.0
libtpu: 0.0.40
codegen_flags: <defaults>
</compile_context>

<pallas_src>
import functools

import jax
import jax.numpy as jnp
import numpy as np
from jax import lax
from jax.experimental import pallas as pl
from jax.experimental.pallas import tpu as pltpu

LN_EPS = 1e-5  # nn.LayerNorm default


def _round_up(x, m):
    return ((x + m - 1) // m) * m


def _pdnorm_kernel(feat_ref, ctx_ref, wmod_ref, avg_ref, vec_ref, out_ref, *, pc):
    """One packed row tile.

    feat_ref : (tm, PC)        P points packed per 128-lane row (PC = P*C)
    ctx_ref  : (tm, PK)        matching packed context (PK = P*K)
    wmod_ref : (PK, 2*PC)      block-diag [W_shift | W_scale] (Linear weight)
    avg_ref  : (PC, PC)        block-diag 1/C averaging matrix (LayerNorm stats)
    vec_ref  : (8, 2*PC)       row0: ln_w, row1: ln_b, row2: [b_shift | b_scale]
    """
    x = feat_ref[...].astype(jnp.float32)

    # ---- LayerNorm per C-lane segment; stats via MXU (row-wise, exact f32) ----
    avg = avg_ref[...]
    mean = jnp.dot(x, avg, preferred_element_type=jnp.float32)       # broadcast per segment
    xc = x - mean
    var = jnp.dot(xc * xc, avg, preferred_element_type=jnp.float32)  # biased, like torch
    xn = xc * lax.rsqrt(var + LN_EPS)
    xn = xn * vec_ref[0:1, :pc] + vec_ref[1:2, :pc]

    # ---- adaptive modulation: single fused matmul -> [shift | scale] ----
    c = ctx_ref[...].astype(jnp.float32)
    s = c * jax.nn.sigmoid(c)                                        # SiLU
    mod = jnp.dot(s, wmod_ref[...], preferred_element_type=jnp.float32) + vec_ref[2:3, :]
    shift = mod[:, :pc]
    scale = mod[:, pc:]

    out_ref[...] = (xn * (1.0 + scale) + shift).astype(out_ref.dtype)


def pack_pdnorm_params(params, condition):
    """Precompute the packed constant operands ONCE per (params, condition).

    Host-side numpy so nothing re-runs on device per forward call.
    """
    conditions = list(params["conditions"])
    assert condition in conditions
    idx = conditions.index(condition)

    ln_w = np.asarray(params["ln_weight"][idx], dtype=np.float32)   # (C,)
    ln_b = np.asarray(params["ln_bias"][idx], dtype=np.float32)     # (C,)
    W = np.asarray(params["mod_weight"], dtype=np.float32)          # (2C, K) torch Linear
    b = np.asarray(params["mod_bias"], dtype=np.float32)            # (2C,)

    C = ln_w.shape[0]
    K = W.shape[1]

    # Lane-dense packing factor: P consecutive points per 128-lane row.
    if C % 128 == 0:
        P = 1
    elif 128 % C == 0:
        P = 128 // C
    else:
        # TODO(synk): C that neither divides nor is a multiple of 128 falls back
        # to a lane-sparse layout (masked partial stores) — correct but slower.
        P = 1
    PC, PK = P * C, P * K

    eye = np.eye(P, dtype=np.float32)
    # Modulation Linear y = s @ W^T + b, block-diagonally packed: [shift | scale].
    w_mod = np.concatenate([np.kron(eye, W[:C].T),
                            np.kron(eye, W[C:].T)], axis=1)          # (PK, 2PC)
    # Block-diagonal per-segment averaging matrix for the LayerNorm statistics.
    avg = np.kron(eye, np.full((C, C), 1.0 / C, dtype=np.float32))   # (PC, PC)

    vecs = np.zeros((8, 2 * PC), np.float32)
    vecs[0, :PC] = np.tile(ln_w, P)
    vecs[1, :PC] = np.tile(ln_b, P)
    vecs[2, :PC] = np.tile(b[:C], P)        # shift bias
    vecs[2, PC:] = np.tile(b[C:], P)        # scale bias

    return {
        "P": P, "C": C, "K": K,
        "w_mod": jnp.asarray(w_mod),
        "avg": jnp.asarray(avg),
        "vecs": jnp.asarray(vecs),
    }


def _choose_tile(rows, tm_req, row_mult):
    """Row-tile (in packed rows) and grid size.

    Keeps the grid even and >= 2 when there is enough work (v7x megacore);
    single-TC chips (v5e/v6e) only pay one extra ~0.35us pipeline step for it.
    """
    tm_cap = max(row_mult, (tm_req // row_mult) * row_mult)
    if rows <= tm_cap:
        if rows >= 4 * row_mult:            # enough work: split across 2 TCs
            tm = _round_up(pl.cdiv(rows, 2), row_mult)
            return tm, pl.cdiv(rows, tm)
        return rows, 1                      # block == full array dim: always legal
    tm = tm_cap
    grid = pl.cdiv(rows, tm)
    if grid > 1 and grid % 2 == 1:          # try to make the grid even
        tm2 = _round_up(pl.cdiv(rows, grid + 1), row_mult)
        grid2 = pl.cdiv(rows, tm2)
        if grid2 % 2 == 0:
            tm, grid = tm2, grid2
    return tm, grid


def pdnorm_forward(feat, context, packed, *, tm=2048):
    """feat: (N, C), context: (N, K); `packed` from pack_pdnorm_params.

    Inputs keep their storage dtype (bf16 halves HBM traffic); math is f32
    inside the kernel and the output is written in feat.dtype.
    `tm` is the row tile in *packed* rows (each holds P points); the default
    2048 is VMEM-safe on v7x, raise it on single-TC v5e/v6e if desired.
    """
    P, C, K = packed["P"], packed["C"], packed["K"]
    N, Cf = feat.shape
    assert Cf == C and context.shape == (N, K)
    PC, PK = P * C, P * K

    # Only the final (< P) points are ever padded; when N % P == 0 there is no
    # copy at all and the reshape to the packed layout is a plain row-major
    # merge.  (The old whole-tensor pad to a tile multiple is gone — the ragged
    # last grid block is handled by Pallas masking; its garbage rows stay
    # row-local and their stores are dropped, so never reduce over rows here.)
    rem = N % P
    if rem:
        feat = jnp.concatenate([feat, jnp.zeros((P - rem, C), feat.dtype)], axis=0)
        context = jnp.concatenate([context, jnp.zeros((P - rem, K), context.dtype)], axis=0)
    rows = feat.shape[0] // P
    feat_p = feat.reshape(rows, PC)
    ctx_p = context.reshape(rows, PK)

    f_isz = jnp.dtype(feat.dtype).itemsize
    c_isz = jnp.dtype(context.dtype).itemsize
    row_mult = {4: 8, 2: 16, 1: 32}[min(f_isz, c_isz)]   # sub-32-bit min-tile
    tm, grid_m = _choose_tile(rows, tm, row_mult)

    # VMEM budget: double-buffered streamed tiles + constants + f32 temporaries.
    stream_bytes = tm * (PC * f_isz + PK * c_isz + PC * f_isz)
    const_bytes = 4 * (PK * 2 * PC + PC * PC + 8 * 2 * PC)
    temp_bytes = 8 * tm * max(PC, PK) * 4
    vmem_limit = int(min(max(2 * (stream_bytes + const_bytes) + temp_bytes, 4 << 20),
                         64 << 20))

    out = pl.pallas_call(
        functools.partial(_pdnorm_kernel, pc=PC),
        out_shape=jax.ShapeDtypeStruct((rows, PC), feat.dtype),
        grid=(grid_m,),
        in_specs=[
            pl.BlockSpec((tm, PC), lambda i: (i, 0)),        # packed feat tile
            pl.BlockSpec((tm, PK), lambda i: (i, 0)),        # packed context tile
            pl.BlockSpec((PK, 2 * PC), lambda i: (0, 0)),    # fused modulation weight (const)
            pl.BlockSpec((PC, PC), lambda i: (0, 0)),        # segmented averaging matrix (const)
            pl.BlockSpec((8, 2 * PC), lambda i: (0, 0)),     # coalesced affine/bias rows (const)
        ],
        out_specs=pl.BlockSpec((tm, PC), lambda i: (i, 0)),
        compiler_params=pltpu.CompilerParams(
            dimension_semantics=("parallel",),
            vmem_limit_bytes=vmem_limit),
    )(feat_p, ctx_p, packed["w_mod"], packed["avg"], packed["vecs"])

    return out.reshape(rows * P, C)[:N]


def _reference(feat, context, condition, params):
    """Pure-JAX reference mirroring the PyTorch forward."""
    idx = list(params["conditions"]).index(condition)
    x = feat.astype(jnp.float32)
    mean = jnp.mean(x, axis=-1, keepdims=True)
    var = jnp.mean((x - mean) ** 2, axis=-1, keepdims=True)
    xn = (x - mean) / jnp.sqrt(var + LN_EPS)
    xn = xn * params["ln_weight"][idx] + params["ln_bias"][idx]
    c = context.astype(jnp.float32)
    s = c * jax.nn.sigmoid(c)
    mod = s @ params["mod_weight"].T + params["mod_bias"]
    C = feat.shape[1]
    shift, scale = mod[:, :C], mod[:, C:]
    return xn * (1.0 + scale) + shift


if __name__ == "__main__":
    C, K = 32, 64
    conditions = ("ScanNet", "S3DIS", "Structured3D")

    key = jax.random.PRNGKey(0)
    k_feat, k_ctx, k_lnw, k_lnb, k_w, k_b = jax.random.split(key, 6)

    params = {
        "conditions": list(conditions),
        # one LayerNorm (weight, bias) per condition; perturb so selection matters
        "ln_weight": 1.0 + 0.05 * jax.random.normal(k_lnw, (len(conditions), C)),
        "ln_bias": 0.05 * jax.random.normal(k_lnb, (len(conditions), C)),
        # modulation = nn.Sequential(SiLU(), Linear(K, 2C)); torch Linear weight is (2C, K)
        "mod_weight": 0.02 * jax.random.normal(k_w, (2 * C, K), dtype=jnp.float32),
        "mod_bias": 0.02 * jax.random.normal(k_b, (2 * C,), dtype=jnp.float32),
    }

    condition = "S3DIS"  # point.condition
    packed = pack_pdnorm_params(params, condition)   # hoisted: once per (params, condition)

    # --- test 1: f32, N not a multiple of the packing factor (tail-pad path) ---
    N1 = 70
    feat1 = jax.random.normal(k_feat, (N1, C), dtype=jnp.float32)
    ctx1 = jax.random.normal(k_ctx, (N1, K), dtype=jnp.float32)
    out1 = jax.block_until_ready(pdnorm_forward(feat1, ctx1, packed))
    ref1 = _reference(feat1, ctx1, condition, params)
    np.testing.assert_allclose(np.asarray(out1), np.asarray(ref1), rtol=1e-5, atol=1e-5)

    # --- test 2: bf16 storage, ragged last grid block (no whole-tensor pad) ---
    N2 = 1000
    feat2 = jax.random.normal(k_feat, (N2, C), dtype=jnp.float32).astype(jnp.bfloat16)
    ctx2 = jax.random.normal(k_ctx, (N2, K), dtype=jnp.float32).astype(jnp.bfloat16)
    out2 = jax.block_until_ready(pdnorm_forward(feat2, ctx2, packed, tm=64))
    ref2 = _reference(feat2.astype(jnp.float32), ctx2.astype(jnp.float32), condition, params)
    np.testing.assert_allclose(np.asarray(out2.astype(jnp.float32)), np.asarray(ref2),
                               rtol=2e-2, atol=2e-2)

    print("KERNEL_OK")
</pallas_src>

<mosaic_0001>
module attributes {stable_mosaic.version = 11 : i64} {
  func.func @_pdnorm_kernel(%arg0: i32, %arg1: memref<18x128xf32, #tpu.memory_space<vmem>>, %arg2: memref<18x256xf32, #tpu.memory_space<vmem>>, %arg3: memref<256x256xf32, #tpu.memory_space<vmem>>, %arg4: memref<128x128xf32, #tpu.memory_space<vmem>>, %arg5: memref<8x256xf32, #tpu.memory_space<vmem>>, %arg6: memref<18x128xf32, #tpu.memory_space<vmem>>) attributes {dimension_semantics = [#tpu.dimension_semantics<parallel>], iteration_bounds = array<i64: 1>, scalar_prefetch = 0 : i64, scratch_operands = 0 : i64, tpu.core_type = #tpu.core_type<tc>, window_params = [{transform_indices = @transform_0, window_bounds = array<i64: 18, 128>}, {transform_indices = @transform_1, window_bounds = array<i64: 18, 256>}, {pipeline_mode = #tpu.pipeline_mode<synchronous>, transform_indices = @transform_2, window_bounds = array<i64: 256, 256>}, {pipeline_mode = #tpu.pipeline_mode<synchronous>, transform_indices = @transform_3, window_bounds = array<i64: 128, 128>}, {pipeline_mode = #tpu.pipeline_mode<synchronous>, transform_indices = @transform_4, window_bounds = array<i64: 8, 256>}, {transform_indices = @transform_5, window_bounds = array<i64: 18, 128>}]} {
    %c0 = arith.constant 0 : index
    %c0_0 = arith.constant 0 : index
    %0 = vector.load %arg1[%c0, %c0_0] : memref<18x128xf32, #tpu.memory_space<vmem>>, vector<18x128xf32>
    %c0_1 = arith.constant 0 : index
    %c0_2 = arith.constant 0 : index
    %1 = vector.load %arg4[%c0_1, %c0_2] : memref<128x128xf32, #tpu.memory_space<vmem>>, vector<128x128xf32>
    %cst = arith.constant dense<0.000000e+00> : vector<18x128xf32>
    %2 = tpu.matmul %0, %1, %cst {dimension_numbers = #tpu.dot_dimension_numbers<[1], [0], [0], [1], [0, 0, 1, 1], [], []>} : vector<18x128xf32>, vector<128x128xf32>, vector<18x128xf32> -> vector<18x128xf32>
    %3 = arith.subf %0, %2 : vector<18x128xf32>
    %4 = arith.mulf %3, %3 : vector<18x128xf32>
    %cst_3 = arith.constant dense<0.000000e+00> : vector<18x128xf32>
    %5 = tpu.matmul %4, %1, %cst_3 {dimension_numbers = #tpu.dot_dimension_numbers<[1], [0], [0], [1], [0, 0, 1, 1], [], []>} : vector<18x128xf32>, vector<128x128xf32>, vector<18x128xf32> -> vector<18x128xf32>
    %cst_4 = arith.constant 9.99999974E-6 : f32
    %6 = vector.broadcast %cst_4 : f32 to vector<18x128xf32>
    %7 = arith.addf %5, %6 : vector<18x128xf32>
    %8 = math.rsqrt %7 : vector<18x128xf32>
    %9 = arith.mulf %3, %8 : vector<18x128xf32>
    %c0_5 = arith.constant 0 : index
    %c0_6 = arith.constant 0 : index
    %10 = vector.load %arg5[%c0_5, %c0_6] : memref<8x256xf32, #tpu.memory_space<vmem>>, vector<1x128xf32>
    %11 = vector.broadcast %10 : vector<1x128xf32> to vector<18x128xf32>
    %12 = arith.mulf %9, %11 : vector<18x128xf32>
    %c1 = arith.constant 1 : index
    %c0_7 = arith.constant 0 : index
    %13 = vector.load %arg5[%c1, %c0_7] : memref<8x256xf32, #tpu.memory_space<vmem>>, vector<1x128xf32>
    %14 = vector.broadcast %13 : vector<1x128xf32> to vector<18x128xf32>
    %15 = arith.addf %12, %14 : vector<18x128xf32>
    %c0_8 = arith.constant 0 : index
    %c0_9 = arith.constant 0 : index
    %16 = vector.load %arg2[%c0_8, %c0_9] : memref<18x256xf32, #tpu.memory_space<vmem>>, vector<18x256xf32>
    %17 = arith.negf %16 : vector<18x256xf32>
    %18 = math.exp %17 : vector<18x256xf32>
    %cst_10 = arith.constant 1.000000e+00 : f32
    %19 = vector.broadcast %cst_10 : f32 to vector<18x256xf32>
    %20 = arith.addf %19, %18 : vector<18x256xf32>
    %21 = arith.divf %19, %20 : vector<18x256xf32>
    %22 = arith.mulf %16, %21 : vector<18x256xf32>
    %c0_11 = arith.constant 0 : index
    %c0_12 = arith.constant 0 : index
    %23 = vector.load %arg3[%c0_11, %c0_12] : memref<256x256xf32, #tpu.memory_space<vmem>>, vector<256x256xf32>
    %cst_13 = arith.constant dense<0.000000e+00> : vector<18x256xf32>
    %24 = tpu.matmul %22, %23, %cst_13 {dimension_numbers = #tpu.dot_dimension_numbers<[1], [0], [0], [1], [0, 0, 1, 1], [], []>} : vector<18x256xf32>, vector<256x256xf32>, vector<18x256xf32> -> vector<18x256xf32>
    %c2 = arith.constant 2 : index
    %c0_14 = arith.constant 0 : index
    %25 = vector.load %arg5[%c2, %c0_14] : memref<8x256xf32, #tpu.memory_space<vmem>>, vector<1x256xf32>
    %26 = vector.broadcast %25 : vector<1x256xf32> to vector<18x256xf32>
    %27 = arith.addf %24, %26 : vector<18x256xf32>
    %28 = vector.extract_strided_slice %27 {offsets = [0, 0], sizes = [18, 128], strides = [1, 1]} : vector<18x256xf32> to vector<18x128xf32>
    %29 = vector.extract_strided_slice %27 {offsets = [0, 128], sizes = [18, 128], strides = [1, 1]} : vector<18x256xf32> to vector<18x128xf32>
    %cst_15 = arith.constant 1.000000e+00 : f32
    %30 = vector.broadcast %cst_15 : f32 to vector<18x128xf32>
    %31 = arith.addf %30, %29 : vector<18x128xf32>
    %32 = arith.mulf %15, %31 : vector<18x128xf32>
    %33 = arith.addf %32, %28 : vector<18x128xf32>
    %c0_16 = arith.constant 0 : index
    %c0_17 = arith.constant 0 : index
    %34 = vector.load %arg6[%c0_16, %c0_17] : memref<18x128xf32, #tpu.memory_space<vmem>>, vector<18x128xf32>
    tpu.vector_store %arg6[%c0_16, %c0_17], %33 {strides = array<i32>} : memref<18x128xf32, #tpu.memory_space<vmem>>, vector<18x128xf32>,
    return
  }
  func.func @transform_0(%arg0: i32) -> (i32, i32) {
    %c0_i32 = arith.constant 0 : i32
    %c0_i32_0 = arith.constant 0 : i32
    return %arg0, %c0_i32 : i32, i32
  }
  func.func @transform_1(%arg0: i32) -> (i32, i32) {
    %c0_i32 = arith.constant 0 : i32
    %c0_i32_0 = arith.constant 0 : i32
    return %arg0, %c0_i32 : i32, i32
  }
  func.func @transform_2(%arg0: i32) -> (i32, i32) {
    %c0_i32 = arith.constant 0 : i32
    %c0_i32_0 = arith.constant 0 : i32
    %c0_i32_1 = arith.constant 0 : i32
    return %c0_i32, %c0_i32_0 : i32, i32
  }
  func.func @transform_3(%arg0: i32) -> (i32, i32) {
    %c0_i32 = arith.constant 0 : i32
    %c0_i32_0 = arith.constant 0 : i32
    %c0_i32_1 = arith.constant 0 : i32
    return %c0_i32, %c0_i32_0 : i32, i32
  }
  func.func @transform_4(%arg0: i32) -> (i32, i32) {
    %c0_i32 = arith.constant 0 : i32
    %c0_i32_0 = arith.constant 0 : i32
    %c0_i32_1 = arith.constant 0 : i32
    return %c0_i32, %c0_i32_0 : i32, i32
  }
  func.func @transform_5(%arg0: i32) -> (i32, i32) {
    %c0_i32 = arith.constant 0 : i32
    %c0_i32_0 = arith.constant 0 : i32
    return %arg0, %c0_i32 : i32, i32
  }
}

</mosaic_0001>

<llo_original>
// kernel: tpu_custom_call.1
$region0: #{tpu_custom_call.1}
  #allocation0 [shape = 'u32[]', space=smem, size = 0x4, offset = 0x4, fixed_abs, tag = 'smem constant byte address 0x4 - core index']
  #allocation1 [shape = 'u32[144,128]{1,0:T(1,128)}', space=vmem, size = 0x12000, scoped, tag = 'internal scratch']
  %s0 = inlined_call_operand.hbm [shape: f32[18,128], index: 0, kind: input, shape index: {}]
  %s1 = inlined_call_operand.hbm [shape: f32[18,256], index: 1, kind: input, shape index: {}]
  %s2 = inlined_call_operand.hbm [shape: f32[256,256], index: 2, kind: input, shape index: {}]
  %s3 = inlined_call_operand.hbm [shape: f32[128,128], index: 3, kind: input, shape index: {}]
  %s4 = inlined_call_operand.hbm [shape: f32[8,256], index: 4, kind: input, shape index: {}]
  %s5 = inlined_call_operand.hbm [shape: f32[18,128], index: 5, kind: output, shape index: {}]
  %s6 = sld [smem:[#allocation0]]
  $region50: #{tpu_custom_call.1} parent=0
    _
  %s8 = ssub.s32 1, %s6
  %s9 = scalar_select 0, %s8, %s6
  $region1: #{tpu_custom_call.1} parent=0
    #allocation2 [shape = 'u8[12288]{0}', space=vmem, size = 0x3000, scoped, tag = 'input window, operand 0, single buffered']
    #allocation3 [shape = 's32[1]{0}', space=sflag, size = 0x4, scoped, tag = 'scoped memory for tpu_custom_call.1']
    #allocation4 [shape = 's32[1]{0}', space=sflag, size = 0x4, scoped, tag = 'scoped memory for tpu_custom_call.1']
    #allocation5 [shape = 'u8[24576]{0}', space=vmem, size = 0x6000, scoped, tag = 'input window, operand 1, single buffered']
    #allocation6 [shape = 's32[1]{0}', space=sflag, size = 0x4, scoped, tag = 'scoped memory for tpu_custom_call.1']
    #allocation7 [shape = 'u8[262144]{0}', space=vmem, size = 0x40000, scoped, tag = 'input window, operand 2, single buffered']
    #allocation8 [shape = 'u8[65536]{0}', space=vmem, size = 0x10000, scoped, tag = 'input window, operand 3, single buffered']
    #allocation9 [shape = 's32[1]{0}', space=sflag, size = 0x4, scoped, tag = 'scoped memory for tpu_custom_call.1']
    #allocation10 [shape = 'u8[8192]{0}', space=vmem, size = 0x2000, scoped, tag = 'input window, operand 4, single buffered']
    #allocation11 [shape = 'u8[12288]{0}', space=vmem, size = 0x3000, scoped, tag = 'output window, operand 0, single buffered']
    %10 = vsyncpa [#allocation3], 0
    %11 = vsyncpa [#allocation6], 0
    %12 = vsyncpa [#allocation9], 0
    %13 = vsyncpa [#allocation4], 0
    // Predicated region
    $region2: #{tpu_custom_call.1} parent=1 // pred_check
      _
    $region3: #{tpu_custom_call.1} parent=1 // pred_check_branch
      %15 = sbr.rel (0) target = $region5
    $region4: #{tpu_custom_call.1} parent=1 // pred_region
      %s17 = ssub.s32 384, 384
      %18 = vsyncadd [#allocation3], %s17
      %s19 = sshll.u32 [#allocation2], 4
      %s20 = int_to_ptr.vmem [resolvable:$true] %s19
      %25 = dma.hbm_to_vmem [thread:$0]  %s0, 384, %s20, [#allocation3], 128, 128, 8
    $region5: #{tpu_custom_call.1} parent=1 // pred_fallthru
      _
    // Predicated region
    $region6: #{tpu_custom_call.1} parent=1 // pred_check
      _
    $region7: #{tpu_custom_call.1} parent=1 // pred_check_branch
      %27 = sbr.rel (0) target = $region9
    $region8: #{tpu_custom_call.1} parent=1 // pred_region
      %s29 = ssub.s32 768, 768
      %30 = vsyncadd [#allocation6], %s29
      %s31 = sshll.u32 [#allocation5], 4
      %s32 = int_to_ptr.vmem [resolvable:$true] %s31
      %37 = dma.hbm_to_vmem [thread:$0]  %s1, 768, %s32, [#allocation6], 256, 256, 16
    $region9: #{tpu_custom_call.1} parent=1 // pred_fallthru
      _
    // Predicated region
    $region10: #{tpu_custom_call.1} parent=1 // pred_check
      _
    $region11: #{tpu_custom_call.1} parent=1 // pred_check_branch
      %39 = sbr.rel (0) target = $region13
    $region12: #{tpu_custom_call.1} parent=1 // pred_region
      %s41 = ssub.s32 8192, 8192
      %42 = vsyncadd [#allocation6], %s41
      %s43 = sshll.u32 [#allocation7], 4
      %s44 = int_to_ptr.vmem [resolvable:$true] %s43
      %49 = dma.hbm_to_vmem [thread:$0]  %s2, 8192, %s44, [#allocation6], 256, 256, 16
    $region13: #{tpu_custom_call.1} parent=1 // pred_fallthru
      _
    // Predicated region
    $region14: #{tpu_custom_call.1} parent=1 // pred_check
      _
    $region15: #{tpu_custom_call.1} parent=1 // pred_check_branch
      %51 = sbr.rel (0) target = $region17
    $region16: #{tpu_custom_call.1} parent=1 // pred_region
      %s53 = ssub.s32 2048, 2048
      %54 = vsyncadd [#allocation9], %s53
      %s55 = sshll.u32 [#allocation8], 4
      %s56 = int_to_ptr.vmem [resolvable:$true] %s55
      %61 = dma.hbm_to_vmem [thread:$0]  %s3, 2048, %s56, [#allocation9], 128, 128, 8
    $region17: #{tpu_custom_call.1} parent=1 // pred_fallthru
      _
    // Predicated region
    $region18: #{tpu_custom_call.1} parent=1 // pred_check
      _
    $region19: #{tpu_custom_call.1} parent=1 // pred_check_branch
      %63 = sbr.rel (0) target = $region21
    $region20: #{tpu_custom_call.1} parent=1 // pred_region
      %s65 = ssub.s32 256, 256
      %66 = vsyncadd [#allocation9], %s65
      %s68 = sshll.u32 [#allocation10], 4
      %s69 = int_to_ptr.vmem [resolvable:$true] %s68
      %71 = dma.hbm_to_vmem [thread:$0]  %s4, 256, %s69, [#allocation9]
    $region21: #{tpu_custom_call.1} parent=1 // pred_fallthru
      _
    // Predicated region
    $region22: #{tpu_custom_call.1} parent=1 // pred_check
      _
    $region23: #{tpu_custom_call.1} parent=1 // pred_check_branch
      %73 = sbr.rel (0) target = $region25
    $region24: #{tpu_custom_call.1} parent=1 // pred_region
      %74 = dma.done [#allocation3], 384
    $region25: #{tpu_custom_call.1} parent=1 // pred_fallthru
      _
    // Predicated region
    $region26: #{tpu_custom_call.1} parent=1 // pred_check
      _
    $region27: #{tpu_custom_call.1} parent=1 // pred_check_branch
      %76 = sbr.rel (0) target = $region29
    $region28: #{tpu_custom_call.1} parent=1 // pred_region
      %77 = dma.done [#allocation6], 768
    $region29: #{tpu_custom_call.1} parent=1 // pred_fallthru
      _
    // Predicated region
    $region30: #{tpu_custom_call.1} parent=1 // pred_check
      _
    $region31: #{tpu_custom_call.1} parent=1 // pred_check_branch
      %79 = sbr.rel (0) target = $region33
    $region32: #{tpu_custom_call.1} parent=1 // pred_region
      %80 = dma.done [#allocation6], 8192
    $region33: #{tpu_custom_call.1} parent=1 // pred_fallthru
      _
    // Predicated region
    $region34: #{tpu_custom_call.1} parent=1 // pred_check
      _
    $region35: #{tpu_custom_call.1} parent=1 // pred_check_branch
      %82 = sbr.rel (0) target = $region37
    $region36: #{tpu_custom_call.1} parent=1 // pred_region
      %83 = dma.done [#allocation9], 2048
    $region37: #{tpu_custom_call.1} parent=1 // pred_fallthru
      _
    // Predicated region
    $region38: #{tpu_custom_call.1} parent=1 // pred_check
      _
    $region39: #{tpu_custom_call.1} parent=1 // pred_check_branch
      %85 = sbr.rel (0) target = $region41
    $region40: #{tpu_custom_call.1} parent=1 // pred_region
      %86 = dma.done [#allocation9], 256
    $region41: #{tpu_custom_call.1} parent=1 // pred_fallthru
      _
    %v87 = vld [vmem:[#allocation2] sm:$0xff]
    %v88 = vld [vmem:[#allocation2 + $0x8] sm:$0xff]
    %v89 = vld [vmem:[#allocation2 + $0x10] sm:$0x3]
    %v90 = vld [vmem:[#allocation8] sm:$0xff]
    %v91 = vld [vmem:[#allocation8 + $0x8] sm:$0xff]
    %v92 = vld [vmem:[#allocation8 + $0x10] sm:$0xff]
    %v93 = vld [vmem:[#allocation8 + $0x18] sm:$0xff]
    %v94 = vld [vmem:[#allocation8 + $0x20] sm:$0xff]
    %v95 = vld [vmem:[#allocation8 + $0x28] sm:$0xff]
    %v96 = vld [vmem:[#allocation8 + $0x30] sm:$0xff]
    %v97 = vld [vmem:[#allocation8 + $0x38] sm:$0xff]
    %v98 = vld [vmem:[#allocation8 + $0x40] sm:$0xff]
    %v99 = vld [vmem:[#allocation8 + $0x48] sm:$0xff]
    %v100 = vld [vmem:[#allocation8 + $0x50] sm:$0xff]
    %v101 = vld [vmem:[#allocation8 + $0x58] sm:$0xff]
    %v102 = vld [vmem:[#allocation8 + $0x60] sm:$0xff]
    %v103 = vld [vmem:[#allocation8 + $0x68] sm:$0xff]
    %v104 = vld [vmem:[#allocation8 + $0x70] sm:$0xff]
    %v105 = vld [vmem:[#allocation8 + $0x78] sm:$0xff]
    %106 = vmatprep.subr.mxu0 0.0
    %107 = vmatpush1.msra.mxu0 %v90
    %108 = vmatprep.subr.mxu0 0.0
    %109 = vmatpush1.msra.mxu0 %v91
    %110 = vmatprep.subr.mxu0 0.0
    %111 = vmatpush1.msra.mxu0 %v92
    %112 = vmatprep.subr.mxu0 0.0
    %113 = vmatpush1.msra.mxu0 %v93
    %114 = vmatprep.subr.mxu0 0.0
    %115 = vmatpush1.msra.mxu0 %v94
    %116 = vmatprep.subr.mxu0 0.0
    %117 = vmatpush1.msra.mxu0 %v95
    %118 = vmatprep.subr.mxu0 0.0
    %119 = vmatpush1.msra.mxu0 %v96
    %120 = vmatprep.subr.mxu0 0.0
    %121 = vmatpush1.msra.mxu0 %v97
    %122 = vmatprep.subr.mxu0 0.0
    %123 = vmatpush1.msra.mxu0 %v98
    %124 = vmatprep.subr.mxu0 0.0
    %125 = vmatpush1.msra.mxu0 %v99
    %126 = vmatprep.subr.mxu0 0.0
    %127 = vmatpush1.msra.mxu0 %v100
    %128 = vmatprep.subr.mxu0 0.0
    %129 = vmatpush1.msra.mxu0 %v101
    %130 = vmatprep.subr.mxu0 0.0
    %131 = vmatpush1.msra.mxu0 %v102
    %132 = vmatprep.subr.mxu0 0.0
    %133 = vmatpush1.msra.mxu0 %v103
    %134 = vmatprep.subr.mxu0 0.0
    %135 = vmatpush1.msra.mxu0 %v104
    %136 = vmatprep.subr.mxu0 0.0
    %137 = vmatpush1.msra.mxu0 %v105
    %138 = vmatprep.subr.mxu0 0.0
    %139 = vmatpush1.msra.mxu0 0.0
    %140 = vmatprep.subr.mxu0 0.0
    %141 = vmatpush1.msra.mxu0 0.0
    %142 = vmatprep.subr.mxu0 0.0
    %143 = vmatpush1.msra.mxu0 0.0
    %144 = vmatprep.subr.mxu0 0.0
    %145 = vmatpush1.msra.mxu0 0.0
    %146 = vmatprep.subr.mxu0 0.0
    %147 = vmatpush1.msra.mxu0 0.0
    %148 = vmatprep.subr.mxu0 0.0
    %149 = vmatpush1.msra.mxu0 0.0
    %150 = vmatprep.subr.mxu0 0.0
    %151 = vmatpush1.msra.mxu0 0.0
    %152 = vmatprep.subr.mxu0 0.0
    %153 = vmatpush1.msra.mxu0 0.0
    %154 = vmatprep.subr.mxu0 0.0
    %155 = vmatpush1.msra.mxu0 0.0
    %156 = vmatprep.subr.mxu0 0.0
    %157 = vmatpush1.msra.mxu0 0.0
    %158 = vmatprep.subr.mxu0 0.0
    %159 = vmatpush1.msra.mxu0 0.0
    %160 = vmatprep.subr.mxu0 0.0
    %161 = vmatpush1.msra.mxu0 0.0
    %162 = vmatprep.subr.mxu0 0.0
    %163 = vmatpush1.msra.mxu0 0.0
    %164 = vmatprep.subr.mxu0 0.0
    %165 = vmatpush1.msra.mxu0 0.0
    %166 = vmatprep.subr.mxu0 0.0
    %167 = vmatpush1.msra.mxu0 0.0
    %168 = vmatprep.subr.mxu0 0.0
    %169 = vmatpush1.msra.mxu0 0.0
    %170 = vmatprep.mubr.f32.mxu0 0.0
    %171 = vmatmul.mubr.f32.gmra.mrb[0].mxu0 %v87
    %v172 = vpop.f32.mrb[0].mxu0
    %v173 = vadd.f32 0.0, %v172
    %v174 = vpop.f32.mrb[0].mxu0
    %175 = vmatprep.mubr.f32.mxu0 0.0
    %176 = vmatmul.mubr.f32.gmra.mrb[0].mxu0 %v88
    %v177 = vpop.f32.mrb[0].mxu0
    %v178 = vadd.f32 0.0, %v177
    %v179 = vpop.f32.mrb[0].mxu0
    %180 = vmatprep.mubr.f32.mxu0 0.0
    %181 = vmatmul.mubr.f32.gmra.mrb[0].mxu0 %v89
    %v182 = vpop.f32.mrb[0].mxu0
    %v183 = vadd.f32 0.0, %v182
    %v184 = vpop.f32.mrb[0].mxu0
    %185 = vdwg.mxu0
    %v186 = vsub.f32 %v87, %v173
    %v187 = vsub.f32 %v88, %v178
    %v188 = vsub.f32 %v89, %v183
    %v189 = vmul.f32 %v186, %v186
    %v190 = vmul.f32 %v187, %v187
    %v191 = vmul.f32 %v188, %v188
    %192 = vmatprep.subr.mxu0 0.0
    %193 = vmatpush1.msra.mxu0 %v90
    %194 = vmatprep.subr.mxu0 0.0
    %195 = vmatpush1.msra.mxu0 %v91
    %196 = vmatprep.subr.mxu0 0.0
    %197 = vmatpush1.msra.mxu0 %v92
    %198 = vmatprep.subr.mxu0 0.0
    %199 = vmatpush1.msra.mxu0 %v93
    %200 = vmatprep.subr.mxu0 0.0
    %201 = vmatpush1.msra.mxu0 %v94
    %202 = vmatprep.subr.mxu0 0.0
    %203 = vmatpush1.msra.mxu0 %v95
    %204 = vmatprep.subr.mxu0 0.0
    %205 = vmatpush1.msra.mxu0 %v96
    %206 = vmatprep.subr.mxu0 0.0
    %207 = vmatpush1.msra.mxu0 %v97
    %208 = vmatprep.subr.mxu0 0.0
    %209 = vmatpush1.msra.mxu0 %v98
    %210 = vmatprep.subr.mxu0 0.0
    %211 = vmatpush1.msra.mxu0 %v99
    %212 = vmatprep.subr.mxu0 0.0
    %213 = vmatpush1.msra.mxu0 %v100
    %214 = vmatprep.subr.mxu0 0.0
    %215 = vmatpush1.msra.mxu0 %v101
    %216 = vmatprep.subr.mxu0 0.0
    %217 = vmatpush1.msra.mxu0 %v102
    %218 = vmatprep.subr.mxu0 0.0
    %219 = vmatpush1.msra.mxu0 %v103
    %220 = vmatprep.subr.mxu0 0.0
    %221 = vmatpush1.msra.mxu0 %v104
    %222 = vmatprep.subr.mxu0 0.0
    %223 = vmatpush1.msra.mxu0 %v105
    %224 = vmatprep.subr.mxu0 0.0
    %225 = vmatpush1.msra.mxu0 0.0
    %226 = vmatprep.subr.mxu0 0.0
    %227 = vmatpush1.msra.mxu0 0.0
    %228 = vmatprep.subr.mxu0 0.0
    %229 = vmatpush1.msra.mxu0 0.0
    %230 = vmatprep.subr.mxu0 0.0
    %231 = vmatpush1.msra.mxu0 0.0
    %232 = vmatprep.subr.mxu0 0.0
    %233 = vmatpush1.msra.mxu0 0.0
    %234 = vmatprep.subr.mxu0 0.0
    %235 = vmatpush1.msra.mxu0 0.0
    %236 = vmatprep.subr.mxu0 0.0
    %237 = vmatpush1.msra.mxu0 0.0
    %238 = vmatprep.subr.mxu0 0.0
    %239 = vmatpush1.msra.mxu0 0.0
    %240 = vmatprep.subr.mxu0 0.0
    %241 = vmatpush1.msra.mxu0 0.0
    %242 = vmatprep.subr.mxu0 0.0
    %243 = vmatpush1.msra.mxu0 0.0
    %244 = vmatprep.subr.mxu0 0.0
    %245 = vmatpush1.msra.mxu0 0.0
    %246 = vmatprep.subr.mxu0 0.0
    %247 = vmatpush1.msra.mxu0 0.0
    %248 = vmatprep.subr.mxu0 0.0
    %249 = vmatpush1.msra.mxu0 0.0
    %250 = vmatprep.subr.mxu0 0.0
    %251 = vmatpush1.msra.mxu0 0.0
    %252 = vmatprep.subr.mxu0 0.0
    %253 = vmatpush1.msra.mxu0 0.0
    %254 = vmatprep.subr.mxu0 0.0
    %255 = vmatpush1.msra.mxu0 0.0
    %256 = vmatprep.mubr.f32.mxu0 0.0
    %257 = vmatmul.mubr.f32.gmra.mrb[0].mxu0 %v189
    %v258 = vpop.f32.mrb[0].mxu0
    %v259 = vadd.f32 1e-05, %v258
    %v260 = vpop.f32.mrb[0].mxu0
    %261 = vmatprep.mubr.f32.mxu0 0.0
    %262 = vmatmul.mubr.f32.gmra.mrb[0].mxu0 %v190
    %v263 = vpop.f32.mrb[0].mxu0
    %v264 = vadd.f32 1e-05, %v263
    %v265 = vpop.f32.mrb[0].mxu0
    %266 = vmatprep.mubr.f32.mxu0 0.0
    %267 = vmatmul.mubr.f32.gmra.mrb[0].mxu0 %v191
    %v268 = vpop.f32.mrb[0].mxu0
    %v269 = vadd.f32 1e-05, %v268
    %v270 = vpop.f32.mrb[0].mxu0
    %271 = vdwg.mxu0
    %v272 = vrsqrt.pop %v259
    %v273 = vrsqrt.pop %v264
    %v274 = vrsqrt.pop %v269
    %v275 = vmul.f32 %v186, %v272
    %v276 = vmul.f32 %v187, %v273
    %v277 = vmul.f32 %v188, %v274
    %v278 = vld [vmem:[#allocation10] ss:$0 sm:$0xff]
    %v279 = vmul.f32 %v275, %v278
    %v280 = vmul.f32 %v276, %v278
    %v281 = vmul.f32 %v277, %v278
    %v282 = vld [vmem:[#allocation10 + $0x1] ss:$0 sm:$0xff]
    %v283 = vadd.f32 %v279, %v282
    %v284 = vadd.f32 %v280, %v282
    %v285 = vadd.f32 %v281, %v282
    %v286 = vld [vmem:[#allocation5] sm:$0xff]
    %v287 = vld [vmem:[#allocation5 + $0x8] sm:$0xff]
    %v288 = vld [vmem:[#allocation5 + $0x10] sm:$0xff]
    %v289 = vld [vmem:[#allocation5 + $0x18] sm:$0xff]
    %v290 = vld [vmem:[#allocation5 + $0x20] sm:$0x3]
    %v291 = vld [vmem:[#allocation5 + $0x28] sm:$0x3]
    %v292 = vxor.u32 %v286, 2147483648
    %v293 = vxor.u32 %v287, 2147483648
    %v294 = vxor.u32 %v288, 2147483648
    %v295 = vxor.u32 %v289, 2147483648
    %v296 = vxor.u32 %v290, 2147483648
    %v297 = vxor.u32 %v291, 2147483648
    %v298 = vmul.f32 %v292, 1.442695
    %v299 = vpow.pop %v298
    %v300 = vmul.f32 %v293, 1.442695
    %v301 = vpow.pop %v300
    %v302 = vmul.f32 %v294, 1.442695
    %v303 = vpow.pop %v302
    %v304 = vmul.f32 %v295, 1.442695
    %v305 = vpow.pop %v304
    %v306 = vmul.f32 %v296, 1.442695
    %v307 = vpow.pop %v306
    %v308 = vmul.f32 %v297, 1.442695
    %v309 = vpow.pop %v308
    %v310 = vadd.f32 %v299, 1.0
    %v311 = vadd.f32 %v301, 1.0
    %v312 = vadd.f32 %v303, 1.0
    %v313 = vadd.f32 %v305, 1.0
    %v314 = vadd.f32 %v307, 1.0
    %v315 = vadd.f32 %v309, 1.0
    %v316 = vrcp.pop %v310
    %v317 = vmul.f32 1.0, %v316
    %v318 = vrcp.pop %v311
    %v319 = vmul.f32 1.0, %v318
    %v320 = vrcp.pop %v312
    %v321 = vmul.f32 1.0, %v320
    %v322 = vrcp.pop %v313
    %v323 = vmul.f32 1.0, %v322
    %v324 = vrcp.pop %v314
    %v325 = vmul.f32 1.0, %v324
    %v326 = vrcp.pop %v315
    %v327 = vmul.f32 1.0, %v326
    %v328 = vmul.f32 %v286, %v317
    %v329 = vmul.f32 %v287, %v319
    %v330 = vmul.f32 %v288, %v321
    %v331 = vmul.f32 %v289, %v323
    %v332 = vmul.f32 %v290, %v325
    %v333 = vmul.f32 %v291, %v327
    %v334 = vld [vmem:[#allocation7] sm:$0xff]
    %v335 = vld [vmem:[#allocation7 + $0x8] sm:$0xff]
    %v336 = vld [vmem:[#allocation7 + $0x10] sm:$0xff]
    %v337 = vld [vmem:[#allocation7 + $0x18] sm:$0xff]
    %v338 = vld [vmem:[#allocation7 + $0x20] sm:$0xff]
    %v339 = vld [vmem:[#allocation7 + $0x28] sm:$0xff]
    %v340 = vld [vmem:[#allocation7 + $0x30] sm:$0xff]
    %v341 = vld [vmem:[#allocation7 + $0x38] sm:$0xff]
    %v342 = vld [vmem:[#allocation7 + $0x40] sm:$0xff]
    %v343 = vld [vmem:[#allocation7 + $0x48] sm:$0xff]
    %v344 = vld [vmem:[#allocation7 + $0x50] sm:$0xff]
    %v345 = vld [vmem:[#allocation7 + $0x58] sm:$0xff]
    %v346 = vld [vmem:[#allocation7 + $0x60] sm:$0xff]
    %v347 = vld [vmem:[#allocation7 + $0x68] sm:$0xff]
    %v348 = vld [vmem:[#allocation7 + $0x70] sm:$0xff]
    %v349 = vld [vmem:[#allocation7 + $0x78] sm:$0xff]
    %v350 = vld [vmem:[#allocation7 + $0x80] sm:$0xff]
    %v351 = vld [vmem:[#allocation7 + $0x88] sm:$0xff]
    %v352 = vld [vmem:[#allocation7 + $0x90] sm:$0xff]
    %v353 = vld [vmem:[#allocation7 + $0x98] sm:$0xff]
    %v354 = vld [vmem:[#allocation7 + $0xa0] sm:$0xff]
    %v355 = vld [vmem:[#allocation7 + $0xa8] sm:$0xff]
    %v356 = vld [vmem:[#allocation7 + $0xb0] sm:$0xff]
    %v357 = vld [vmem:[#allocation7 + $0xb8] sm:$0xff]
    %v358 = vld [vmem:[#allocation7 + $0xc0] sm:$0xff]
    %v359 = vld [vmem:[#allocation7 + $0xc8] sm:$0xff]
    %v360 = vld [vmem:[#allocation7 + $0xd0] sm:$0xff]
    %v361 = vld [vmem:[#allocation7 + $0xd8] sm:$0xff]
    %v362 = vld [vmem:[#allocation7 + $0xe0] sm:$0xff]
    %v363 = vld [vmem:[#allocation7 + $0xe8] sm:$0xff]
    %v364 = vld [vmem:[#allocation7 + $0xf0] sm:$0xff]
    %v365 = vld [vmem:[#allocation7 + $0xf8] sm:$0xff]
    %v366 = vld [vmem:[#allocation7 + $0x100] sm:$0xff]
    %v367 = vld [vmem:[#allocation7 + $0x108] sm:$0xff]
    %v368 = vld [vmem:[#allocation7 + $0x110] sm:$0xff]
    %v369 = vld [vmem:[#allocation7 + $0x118] sm:$0xff]
    %v370 = vld [vmem:[#allocation7 + $0x120] sm:$0xff]
    %v371 = vld [vmem:[#allocation7 + $0x128] sm:$0xff]
    %v372 = vld [vmem:[#allocation7 + $0x130] sm:$0xff]
    %v373 = vld [vmem:[#allocation7 + $0x138] sm:$0xff]
    %v374 = vld [vmem:[#allocation7 + $0x140] sm:$0xff]
    %v375 = vld [vmem:[#allocation7 + $0x148] sm:$0xff]
    %v376 = vld [vmem:[#allocation7 + $0x150] sm:$0xff]
    %v377 = vld [vmem:[#allocation7 + $0x158] sm:$0xff]
    %v378 = vld [vmem:[#allocation7 + $0x160] sm:$0xff]
    %v379 = vld [vmem:[#allocation7 + $0x168] sm:$0xff]
    %v380 = vld [vmem:[#allocation7 + $0x170] sm:$0xff]
    %v381 = vld [vmem:[#allocation7 + $0x178] sm:$0xff]
    %v382 = vld [vmem:[#allocation7 + $0x180] sm:$0xff]
    %v383 = vld [vmem:[#allocation7 + $0x188] sm:$0xff]
    %v384 = vld [vmem:[#allocation7 + $0x190] sm:$0xff]
    %v385 = vld [vmem:[#allocation7 + $0x198] sm:$0xff]
    %v386 = vld [vmem:[#allocation7 + $0x1a0] sm:$0xff]
    %v387 = vld [vmem:[#allocation7 + $0x1a8] sm:$0xff]
    %v388 = vld [vmem:[#allocation7 + $0x1b0] sm:$0xff]
    %v389 = vld [vmem:[#allocation7 + $0x1b8] sm:$0xff]
    %v390 = vld [vmem:[#allocation7 + $0x1c0] sm:$0xff]
    %v391 = vld [vmem:[#allocation7 + $0x1c8] sm:$0xff]
    %v392 = vld [vmem:[#allocation7 + $0x1d0] sm:$0xff]
    %v393 = vld [vmem:[#allocation7 + $0x1d8] sm:$0xff]
    %v394 = vld [vmem:[#allocation7 + $0x1e0] sm:$0xff]
    %v395 = vld [vmem:[#allocation7 + $0x1e8] sm:$0xff]
    %v396 = vld [vmem:[#allocation7 + $0x1f0] sm:$0xff]
    %v397 = vld [vmem:[#allocation7 + $0x1f8] sm:$0xff]
    %s398 = scalar_lea.vmem [#allocation10], 2
    %v399 = vld [vmem:[%s398] ss:$8 sm:$0x3]
    %v401 = vlaneseq
    %v402 = vshrl.u32 %v401, 7
    %v403 = vsub.s32 0, %v402
    %v404 = vrot.slane %v399, %v403
    %v405 = vlaneseq
    %v406 = vshrl.u32 %v405, 7
    %v407 = vsub.s32 1, %v406
    %v408 = vrot.slane %v399, %v407
    %411 = vmatprep.subr.mxu0 %v335
    %412 = vmatpush1.msra.mxu0 %v334
    %413 = vmatprep.subr.mxu0 %v337
    %414 = vmatpush1.msra.mxu0 %v336
    %415 = vmatprep.subr.mxu0 %v339
    %416 = vmatpush1.msra.mxu0 %v338
    %417 = vmatprep.subr.mxu0 %v341
    %418 = vmatpush1.msra.mxu0 %v340
    %419 = vmatprep.subr.mxu0 %v343
    %420 = vmatpush1.msra.mxu0 %v342
    %421 = vmatprep.subr.mxu0 %v345
    %422 = vmatpush1.msra.mxu0 %v344
    %423 = vmatprep.subr.mxu0 %v347
    %424 = vmatpush1.msra.mxu0 %v346
    %425 = vmatprep.subr.mxu0 %v349
    %426 = vmatpush1.msra.mxu0 %v348
    %427 = vmatprep.subr.mxu0 %v351
    %428 = vmatpush1.msra.mxu0 %v350
    %429 = vmatprep.subr.mxu0 %v353
    %430 = vmatpush1.msra.mxu0 %v352
    %431 = vmatprep.subr.mxu0 %v355
    %432 = vmatpush1.msra.mxu0 %v354
    %433 = vmatprep.subr.mxu0 %v357
    %434 = vmatpush1.msra.mxu0 %v356
    %435 = vmatprep.subr.mxu0 %v359
    %436 = vmatpush1.msra.mxu0 %v358
    %437 = vmatprep.subr.mxu0 %v361
    %438 = vmatpush1.msra.mxu0 %v360
    %439 = vmatprep.subr.mxu0 %v363
    %440 = vmatpush1.msra.mxu0 %v362
    %441 = vmatprep.subr.mxu0 %v365
    %442 = vmatpush1.msra.mxu0 %v364
    %443 = vmatprep.subr.mxu0 %v367
    %444 = vmatpush1.msra.mxu0 %v366
    %445 = vmatprep.subr.mxu0 %v369
    %446 = vmatpush1.msra.mxu0 %v368
    %447 = vmatprep.subr.mxu0 %v371
    %448 = vmatpush1.msra.mxu0 %v370
    %449 = vmatprep.subr.mxu0 %v373
    %450 = vmatpush1.msra.mxu0 %v372
    %451 = vmatprep.subr.mxu0 %v375
    %452 = vmatpush1.msra.mxu0 %v374
    %453 = vmatprep.subr.mxu0 %v377
    %454 = vmatpush1.msra.mxu0 %v376
    %455 = vmatprep.subr.mxu0 %v379
    %456 = vmatpush1.msra.mxu0 %v378
    %457 = vmatprep.subr.mxu0 %v381
    %458 = vmatpush1.msra.mxu0 %v380
    %459 = vmatprep.subr.mxu0 %v383
    %460 = vmatpush1.msra.mxu0 %v382
    %461 = vmatprep.subr.mxu0 %v385
    %462 = vmatpush1.msra.mxu0 %v384
    %463 = vmatprep.subr.mxu0 %v387
    %464 = vmatpush1.msra.mxu0 %v386
    %465 = vmatprep.subr.mxu0 %v389
    %466 = vmatpush1.msra.mxu0 %v388
    %467 = vmatprep.subr.mxu0 %v391
    %468 = vmatpush1.msra.mxu0 %v390
    %469 = vmatprep.subr.mxu0 %v393
    %470 = vmatpush1.msra.mxu0 %v392
    %471 = vmatprep.subr.mxu0 %v395
    %472 = vmatpush1.msra.mxu0 %v394
    %473 = vmatprep.subr.mxu0 %v397
    %474 = vmatpush1.msra.mxu0 %v396
    %475 = vmatprep.mubr.f32.mxu0 %v329
    %476 = vmatmul.mubr.f32.gmra.mrb[0].mxu0 %v328
    %v477 = vpop.f32.mrb[0].mxu0
    %v478 = vadd.f32 %v404, %v477
    %v479 = vpop.f32.mrb[0].mxu0
    %v480 = vadd.f32 %v408, %v479
    %481 = vmatprep.mubr.f32.mxu0 %v331
    %482 = vmatmul.mubr.f32.gmra.mrb[0].mxu0 %v330
    %v483 = vpop.f32.mrb[0].mxu0
    %v484 = vadd.f32 %v404, %v483
    %v485 = vpop.f32.mrb[0].mxu0
    %v486 = vadd.f32 %v408, %v485
    %487 = vmatprep.mubr.f32.mxu0 %v333
    %488 = vmatmul.mubr.f32.gmra.mrb[0].mxu0 %v332
    %v489 = vpop.f32.mrb[0].mxu0
    %v490 = vadd.f32 %v404, %v489
    %v491 = vpop.f32.mrb[0].mxu0
    %v492 = vadd.f32 %v408, %v491
    %493 = vdwg.mxu0
    %v494 = vadd.f32 %v480, 1.0
    %v495 = vadd.f32 %v486, 1.0
    %v496 = vadd.f32 %v492, 1.0
    %v497 = vmul.f32 %v283, %v494
    %v498 = vmul.f32 %v284, %v495
    %v499 = vmul.f32 %v285, %v496
    %v500 = vadd.f32 %v497, %v478
    %v501 = vadd.f32 %v498, %v484
    %v502 = vadd.f32 %v499, %v490
    %503 = vst [vmem:[#allocation11] sm:$0xff] %v500
    %504 = vst [vmem:[#allocation11 + $0x8] sm:$0xff] %v501
    %505 = vst [vmem:[#allocation11 + $0x10] sm:$0x3] %v502
    // Predicated region
    $region42: #{tpu_custom_call.1} parent=1 // pred_check
      _
    $region43: #{tpu_custom_call.1} parent=1 // pred_check_branch
      %507 = sbr.rel (0) target = $region45
    $region44: #{tpu_custom_call.1} parent=1 // pred_region
      %s509 = ssub.s32 384, 384
      %510 = vsyncadd [#allocation4], %s509
      %s511 = sshll.u32 [#allocation11], 4
      %s512 = int_to_ptr.vmem [resolvable:$true] %s511
      %517 = dma.vmem_to_hbm [thread:$0]  %s512, 384, %s5, [#allocation4], 128, 128, 8
    $region45: #{tpu_custom_call.1} parent=1 // pred_fallthru
      _
    // Predicated region
    $region46: #{tpu_custom_call.1} parent=1 // pred_check
      _
    $region47: #{tpu_custom_call.1} parent=1 // pred_check_branch
      %519 = sbr.rel (0) target = $region49
    $region48: #{tpu_custom_call.1} parent=1 // pred_region
      %520 = dma.done [#allocation4], 384
    $region49: #{tpu_custom_call.1} parent=1 // pred_fallthru
      _
    %521 = vsyncpa [#allocation3], 1
    %522 = vsyncpa [#allocation6], 1
    %523 = vsyncpa [#allocation9], 1
    %524 = vsyncpa [#allocation4], 1

</llo_original>
